<compile_context>
chip_gen: v6e
topology: v6e:2x2x1
jax: 0.10.0
libtpu: 0.0.40
codegen_flags: <defaults>
</compile_context>

<pallas_src>
import jax
import jax.numpy as jnp
from jax.experimental import pallas as pl
from jax.experimental.pallas import tpu as pltpu

EPS = 1e-5  # nn.LayerNorm default


def _proj_kernel(p_ref, w_ref, b_ref, o_ref):
    # p_ref: (tm, K) bf16 patches; w_ref: (K, E) bf16; b_ref: (1, E) f32
    y = jnp.dot(p_ref[...], w_ref[...], preferred_element_type=jnp.float32)
    o_ref[...] = (y + b_ref[...]).astype(o_ref.dtype)


def _proj_ln_kernel(p_ref, w_ref, b_ref, g_ref, be_ref, o_ref):
    # Projection in bf16 on the MXU (f32 accumulate); LayerNorm stats in f32.
    y = jnp.dot(p_ref[...], w_ref[...], preferred_element_type=jnp.float32)
    y = y + b_ref[...]
    mean = jnp.mean(y, axis=-1, keepdims=True)
    var = jnp.mean((y - mean) * (y - mean), axis=-1, keepdims=True)  # biased (PyTorch)
    yn = (y - mean) * jax.lax.rsqrt(var + EPS)
    o_ref[...] = (yn * g_ref[...] + be_ref[...]).astype(o_ref.dtype)


def _round_up(a, b):
    return (a + b - 1) // b * b


def patch_embed(x, w_proj, b_proj, patch_size=4, gamma=None, beta=None, *,
                tm=8192, compute_dtype=jnp.bfloat16, out_dtype=jnp.bfloat16):
    """Pallas implementation of PatchEmbed.forward.

    x:       (B, C, H, W)
    w_proj:  (embed_dim, C, p, p)   PyTorch Conv2d weight
    b_proj:  (embed_dim,)           PyTorch Conv2d bias
    gamma/beta: optional (embed_dim,) LayerNorm affine params (None -> Identity)
    returns  (tokens (B, H'*W', embed_dim) in out_dtype, H', W')
    """
    B, C, H, W = x.shape
    p = patch_size
    E = w_proj.shape[0]
    assert w_proj.shape == (E, C, p, p)

    # ---- pad H, W up to a multiple of patch_size (matches F.pad in forward) ----
    pad_h = (-H) % p
    pad_w = (-W) % p
    if pad_h or pad_w:
        x = jnp.pad(x, ((0, 0), (0, 0), (0, pad_h), (0, pad_w)))
    Hp, Wp = H + pad_h, W + pad_w
    nH, nW = Hp // p, Wp // p

    K = C * p * p
    M = B * nH * nW

    # Row tile: as large as possible (cap tm) to amortize the ~0.35us/step
    # overhead, but keep >=2 grid steps when M allows it (v7x has 2 TCs).
    tm_eff = max(8, min(tm, _round_up(pl.cdiv(M, 2), 8)))
    grid = pl.cdiv(M, tm_eff)
    M_pad = grid * tm_eff

    # ---- glue: im2col patch extraction (layout only; bf16 halves the bytes).
    # With allow_input_fusion on operand 0 this whole chain (cast/reshape/
    # transpose/pad) is fused into the kernel's input DMA, so the patches
    # array is never written back to HBM.
    patches = (
        x.astype(compute_dtype)
         .reshape(B, C, nH, p, nW, p)
         .transpose(0, 2, 4, 1, 3, 5)            # (B, nH, nW, C, ph, pw)
         .reshape(M, K)                           # rows flattened as (C, kh, kw)
    )
    if M_pad != M:
        # Zero rows keep LayerNorm inputs well-defined; the corresponding
        # output rows are never written (masked partial last block).
        patches = jnp.pad(patches, ((0, M_pad - M), (0, 0)))

    # Weight to (K, E) in bf16 once, in the wrapper (no in-kernel re-casts).
    w = jnp.transpose(w_proj.reshape(E, K)).astype(compute_dtype)   # (K, E)
    b = b_proj.reshape(1, E).astype(jnp.float32)

    use_norm = gamma is not None
    kernel = _proj_ln_kernel if use_norm else _proj_kernel

    in_specs = [
        pl.BlockSpec((tm_eff, K), lambda i: (i, 0)),
        pl.BlockSpec((K, E), lambda i: (0, 0)),
        pl.BlockSpec((1, E), lambda i: (0, 0)),
    ]
    args = [patches, w, b]
    if use_norm:
        in_specs += [pl.BlockSpec((1, E), lambda i: (0, 0)),
                     pl.BlockSpec((1, E), lambda i: (0, 0))]
        args += [gamma.reshape(1, E).astype(jnp.float32),
                 beta.reshape(1, E).astype(jnp.float32)]

    out = pl.pallas_call(
        kernel,
        # Exactly M rows: no explicit output padding and no out[:M] copy;
        # Pallas masks the writeback of the partial last block.
        out_shape=jax.ShapeDtypeStruct((M, E), out_dtype),
        grid_spec=pltpu.PrefetchScalarGridSpec(
            num_scalar_prefetch=0,
            grid=(grid,),
            in_specs=in_specs,
            out_specs=pl.BlockSpec((tm_eff, E), lambda i: (i, 0)),
        ),
        compiler_params=pltpu.CompilerParams(
            dimension_semantics=("parallel",),
            vmem_limit_bytes=32 * 1024 * 1024,
            allow_input_fusion=[True] + [False] * (len(args) - 1),
        ),
    )(*args)

    return out.reshape(B, nH * nW, E), nH, nW


if __name__ == "__main__":
    # Module defaults: patch_size=4, in_c=3, embed_dim=96.
    # H=17, W=18 exercises the internal padding path.
    B, C, H, W = 2, 3, 17, 18
    patch_size, embed_dim = 4, 96

    key = jax.random.PRNGKey(0)
    kx, kw, kb = jax.random.split(key, 3)
    x = jax.random.normal(kx, (B, C, H, W), dtype=jnp.float32)
    w_proj = 0.02 * jax.random.normal(kw, (embed_dim, C, patch_size, patch_size),
                                      dtype=jnp.float32)
    b_proj = 0.01 * jax.random.normal(kb, (embed_dim,), dtype=jnp.float32)
    gamma = jnp.ones((embed_dim,), dtype=jnp.float32)
    beta = jnp.zeros((embed_dim,), dtype=jnp.float32)

    # ---- pure-JAX f32 reference: real strided conv + flatten + transpose ----
    pad_h = (-H) % patch_size
    pad_w = (-W) % patch_size
    xp = jnp.pad(x, ((0, 0), (0, 0), (0, pad_h), (0, pad_w)))
    ref = jax.lax.conv_general_dilated(
        xp, w_proj, window_strides=(patch_size, patch_size), padding="VALID",
        dimension_numbers=("NCHW", "OIHW", "NCHW"))
    ref = ref + b_proj.reshape(1, embed_dim, 1, 1)
    _, _, Hr, Wr = ref.shape
    ref_tokens = ref.reshape(B, embed_dim, Hr * Wr).transpose(0, 2, 1)

    # ---- default forward (norm_layer=None -> Identity) ----
    out, Ho, Wo = patch_embed(x, w_proj, b_proj, patch_size)
    out = jax.block_until_ready(out)
    assert (Ho, Wo) == (Hr, Wr), (Ho, Wo, Hr, Wr)
    assert out.shape == ref_tokens.shape, out.shape
    err = float(jnp.max(jnp.abs(out.astype(jnp.float32) - ref_tokens)))
    assert err < 2e-2, err  # bf16 MXU path + bf16 store vs f32 conv reference

    # ---- norm_layer=nn.LayerNorm path ----
    out_ln, _, _ = patch_embed(x, w_proj, b_proj, patch_size, gamma, beta)
    out_ln = jax.block_until_ready(out_ln)
    mean = jnp.mean(ref_tokens, -1, keepdims=True)
    var = jnp.mean((ref_tokens - mean) ** 2, -1, keepdims=True)
    ref_ln = (ref_tokens - mean) / jnp.sqrt(var + EPS) * gamma + beta
    err_ln = float(jnp.max(jnp.abs(out_ln.astype(jnp.float32) - ref_ln)))
    assert err_ln < 6e-2, err_ln  # bf16 compute + bf16 store vs f32 reference

    print("KERNEL_OK")
</pallas_src>

<mosaic_0001>
module attributes {stable_mosaic.version = 11 : i64} {
  func.func @_proj_kernel(%arg0: i32, %arg1: memref<32x48xbf16, #tpu.memory_space<vmem>>, %arg2: memref<48x96xbf16, #tpu.memory_space<vmem>>, %arg3: memref<1x96xf32, #tpu.memory_space<vmem>>, %arg4: memref<32x96xbf16, #tpu.memory_space<vmem>>) attributes {dimension_semantics = [#tpu.dimension_semantics<parallel>], iteration_bounds = array<i64: 2>, scalar_prefetch = 0 : i64, scratch_operands = 0 : i64, tpu.core_type = #tpu.core_type<tc>, window_params = [{transform_indices = @transform_0, window_bounds = array<i64: 32, 48>}, {pipeline_mode = #tpu.pipeline_mode<synchronous>, transform_indices = @transform_1, window_bounds = array<i64: 48, 96>}, {pipeline_mode = #tpu.pipeline_mode<synchronous>, transform_indices = @transform_2, window_bounds = array<i64: 1, 96>}, {transform_indices = @transform_3, window_bounds = array<i64: 32, 96>}]} {
    %c0 = arith.constant 0 : index
    %c0_0 = arith.constant 0 : index
    %0 = vector.load %arg1[%c0, %c0_0] : memref<32x48xbf16, #tpu.memory_space<vmem>>, vector<32x48xbf16>
    %c0_1 = arith.constant 0 : index
    %c0_2 = arith.constant 0 : index
    %1 = vector.load %arg2[%c0_1, %c0_2] : memref<48x96xbf16, #tpu.memory_space<vmem>>, vector<48x96xbf16>
    %cst = arith.constant dense<0.000000e+00> : vector<32x96xf32>
    %2 = tpu.matmul %0, %1, %cst {dimension_numbers = #tpu.dot_dimension_numbers<[1], [0], [0], [1], [0, 0, 1, 1], [], []>} : vector<32x48xbf16>, vector<48x96xbf16>, vector<32x96xf32> -> vector<32x96xf32>
    %c0_3 = arith.constant 0 : index
    %c0_4 = arith.constant 0 : index
    %3 = vector.load %arg3[%c0_3, %c0_4] : memref<1x96xf32, #tpu.memory_space<vmem>>, vector<1x96xf32>
    %4 = vector.broadcast %3 : vector<1x96xf32> to vector<32x96xf32>
    %5 = arith.addf %2, %4 : vector<32x96xf32>
    %6 = arith.truncf %5 : vector<32x96xf32> to vector<32x96xbf16>
    %c0_5 = arith.constant 0 : index
    %c0_6 = arith.constant 0 : index
    %7 = vector.load %arg4[%c0_5, %c0_6] : memref<32x96xbf16, #tpu.memory_space<vmem>>, vector<32x96xbf16>
    tpu.vector_store %arg4[%c0_5, %c0_6], %6 {strides = array<i32>} : memref<32x96xbf16, #tpu.memory_space<vmem>>, vector<32x96xbf16>,
    return
  }
  func.func @transform_0(%arg0: i32) -> (i32, i32) {
    %c0_i32 = arith.constant 0 : i32
    %c0_i32_0 = arith.constant 0 : i32
    return %arg0, %c0_i32 : i32, i32
  }
  func.func @transform_1(%arg0: i32) -> (i32, i32) {
    %c0_i32 = arith.constant 0 : i32
    %c0_i32_0 = arith.constant 0 : i32
    %c0_i32_1 = arith.constant 0 : i32
    return %c0_i32, %c0_i32_0 : i32, i32
  }
  func.func @transform_2(%arg0: i32) -> (i32, i32) {
    %c0_i32 = arith.constant 0 : i32
    %c0_i32_0 = arith.constant 0 : i32
    %c0_i32_1 = arith.constant 0 : i32
    return %c0_i32, %c0_i32_0 : i32, i32
  }
  func.func @transform_3(%arg0: i32) -> (i32, i32) {
    %c0_i32 = arith.constant 0 : i32
    %c0_i32_0 = arith.constant 0 : i32
    return %arg0, %c0_i32 : i32, i32
  }
}

</mosaic_0001>

<llo_original>
// kernel: tpu_custom_call.1
$region0: #{tpu_custom_call.1}
  #allocation0 [shape = 'u32[]', space=smem, size = 0x4, offset = 0x4, fixed_abs, tag = 'smem constant byte address 0x4 - core index']
  #allocation1 [shape = 'u32[144,128]{1,0:T(1,128)}', space=vmem, size = 0x12000, scoped, tag = 'internal scratch']
  %s0 = inlined_call_operand.vmem [shape: bf16[64,48], index: 0, kind: input, shape index: {}]
  %s1 = inlined_call_operand.vmem [shape: bf16[48,96], index: 1, kind: input, shape index: {}]
  %s2 = inlined_call_operand.vmem [shape: f32[1,96], index: 2, kind: input, shape index: {}]
  %s3 = inlined_call_operand.hbm [shape: bf16[50,96], index: 3, kind: output, shape index: {}]
  %s4 = sld [smem:[#allocation0]]
  $region45: #{tpu_custom_call.1} parent=0
    _
  %s6 = ssub.s32 1, %s4
  %s7 = scalar_select 0, %s6, %s4
  $region1: #{tpu_custom_call.1} parent=0
    #allocation2 [shape = 'u8[16384]{0}', space=vmem, size = 0x4000, scoped, tag = 'output window, operand 0']
    #allocation3 [shape = 's32[2]{0}', space=sflag, size = 0x8, scoped, tag = 'scoped memory for tpu_custom_call.1']
    %8 = vsyncpa [#allocation3], 0
    %s9 = scalar_lea.sflag [#allocation3], 1
    %10 = vsyncpa %s9, 0
    loop: start=0, step=1, limit=4
    $region2: #{tpu_custom_call.1} parent=1 // loop_pre_header
      _
    $region3: #{tpu_custom_call.1} parent=1 // loop_header
      %s12 = sphi 0, %s16
      %p13 = scmp.ge.s32.totalorder %s12, 4
      %s22 = sphi 0, %s24
      %s25 = sphi 0, %s22
      %s26 = sphi 0, %s25
      %s42 = sphi 0, %s26
      %s46 = sphi 0, %s46
      %s48 = sphi 0, %s46
      %s49 = sphi 0, %s48
      %s63 = sphi 0, %s49
      %s67 = sphi 0, %s67
      %s69 = sphi 0, %s67
      %s70 = sphi 0, %s69
      %s84 = sphi 0, %s70
      %s90 = sphi 0, %s92
      %s93 = sphi 0, %s90
      %s94 = sphi 0, %s93
      %s110 = sphi 0, %s94
    $region4: #{tpu_custom_call.1} parent=1 // loop_header_branch
      %15 = sbr.rel (%p13) target = $region8
    $region5: #{tpu_custom_call.1} parent=1 // loop_body
      %s17 = ssub.s32 %s12, 1
      %s18 = ssub.s32 %s12, 2
      %s19 = sadd.s32 %s12, 1
      %s20 = ssub.s32 %s12, %s19
      %p21 = scmp.eq.s32.totalorder %s20, 0
      %s23 = sadd.s32 %s22, 1
      %s24 = scalar_select %p21, %s22, %s23
      %p27 = pneg %p21
      %p28 = scmp.eq.s32.totalorder %s12, 1
      %p29 = por %p27, %p28
      %p30 = scmp.ne.s32.totalorder %s22, %s25
      %p31 = scmp.eq.s32.totalorder %s12, 0
      %p32 = por %p30, %p31
      %p33 = scmp.ne.s32.totalorder %s22, %s25
      %p34 = scmp.eq.s32.totalorder %s17, 1
      %p35 = por %p33, %p34
      %p36 = scmp.ne.s32.totalorder %s25, %s26
      %p37 = scmp.eq.s32.totalorder %s17, 0
      %p38 = por %p36, %p37
      %p39 = scmp.ne.s32.totalorder %s25, %s26
      %p40 = scmp.eq.s32.totalorder %s18, 1
      %p41 = por %p39, %p40
      %p43 = scmp.ne.s32.totalorder %s26, %s42
      %p44 = scmp.eq.s32.totalorder %s18, 0
      %p45 = por %p43, %p44
      %s47 = sadd.s32 %s46, 1
      %p50 = scmp.eq.s32.totalorder %s12, 1
      %p51 = scmp.ne.s32.totalorder %s46, %s48
      %p52 = scmp.eq.s32.totalorder %s12, 0
      %p53 = por %p51, %p52
      %p54 = scmp.ne.s32.totalorder %s46, %s48
      %p55 = scmp.eq.s32.totalorder %s17, 1
      %p56 = por %p54, %p55
      %p57 = scmp.ne.s32.totalorder %s48, %s49
      %p58 = scmp.eq.s32.totalorder %s17, 0
      %p59 = por %p57, %p58
      %p60 = scmp.ne.s32.totalorder %s48, %s49
      %p61 = scmp.eq.s32.totalorder %s18, 1
      %p62 = por %p60, %p61
      %p64 = scmp.ne.s32.totalorder %s49, %s63
      %p65 = scmp.eq.s32.totalorder %s18, 0
      %p66 = por %p64, %p65
      %s68 = sadd.s32 %s67, 1
      %p71 = scmp.eq.s32.totalorder %s12, 1
      %p72 = scmp.ne.s32.totalorder %s67, %s69
      %p73 = scmp.eq.s32.totalorder %s12, 0
      %p74 = por %p72, %p73
      %p75 = scmp.ne.s32.totalorder %s67, %s69
      %p76 = scmp.eq.s32.totalorder %s17, 1
      %p77 = por %p75, %p76
      %p78 = scmp.ne.s32.totalorder %s69, %s70
      %p79 = scmp.eq.s32.totalorder %s17, 0
      %p80 = por %p78, %p79
      %p81 = scmp.ne.s32.totalorder %s69, %s70
      %p82 = scmp.eq.s32.totalorder %s18, 1
      %p83 = por %p81, %p82
      %p85 = scmp.ne.s32.totalorder %s70, %s84
      %p86 = scmp.eq.s32.totalorder %s18, 0
      %p87 = por %p85, %p86
      %s88 = ssub.s32 %s12, %s19
      %p89 = scmp.eq.s32.totalorder %s88, 0
      %s91 = sadd.s32 %s90, 1
      %s92 = scalar_select %p89, %s90, %s91
      %p95 = pneg %p89
      %p96 = scmp.eq.s32.totalorder %s12, 1
      %p97 = por %p95, %p96
      %p98 = scmp.ne.s32.totalorder %s90, %s93
      %p99 = scmp.eq.s32.totalorder %s12, 0
      %p100 = por %p98, %p99
      %p101 = scmp.ne.s32.totalorder %s90, %s93
      %p102 = scmp.eq.s32.totalorder %s17, 1
      %p103 = por %p101, %p102
      %p104 = scmp.ne.s32.totalorder %s93, %s94
      %p105 = scmp.eq.s32.totalorder %s17, 0
      %p106 = por %p104, %p105
      %p107 = scmp.ne.s32.totalorder %s93, %s94
      %p108 = scmp.eq.s32.totalorder %s18, 1
      %p109 = por %p107, %p108
      %p111 = scmp.ne.s32.totalorder %s94, %s110
      %p112 = scmp.eq.s32.totalorder %s18, 0
      %p113 = por %p111, %p112
      %p114 = scmp.le.s32.totalorder 1, %s12
      %p115 = scmp.lt.s32.totalorder %s12, 3
      %p116 = pnand %p114, %p115
      %p117 = pneg %p116
      // Predicated region
      $region9: #{tpu_custom_call.1} parent=5 // pred_check
        _
      $region10: #{tpu_custom_call.1} parent=5 // pred_check_branch
        %119 = sbr.rel (%p116) target = $region12
      $region11: #{tpu_custom_call.1} parent=5 // pred_region
        %s120 = ssub.s32 %s12, 1
        // Predicated region
        $region13: #{tpu_custom_call.1} parent=11 // pred_check
          %p121 = pneg %p59
        $region14: #{tpu_custom_call.1} parent=11 // pred_check_branch
          %123 = sbr.rel (%p121) target = $region16
        $region15: #{tpu_custom_call.1} parent=11 // pred_region
          _
        $region16: #{tpu_custom_call.1} parent=11 // pred_fallthru
          _
        // Predicated region
        $region17: #{tpu_custom_call.1} parent=11 // pred_check
          %p124 = pneg %p80
        $region18: #{tpu_custom_call.1} parent=11 // pred_check_branch
          %126 = sbr.rel (%p124) target = $region20
        $region19: #{tpu_custom_call.1} parent=11 // pred_region
          _
        $region20: #{tpu_custom_call.1} parent=11 // pred_fallthru
          _
      $region12: #{tpu_custom_call.1} parent=5 // pred_fallthru
        _
      %p127 = scmp.lt.s32.totalorder %s12, 2
      // Predicated region
      $region21: #{tpu_custom_call.1} parent=5 // pred_check
        %p128 = pneg %p127
      $region22: #{tpu_custom_call.1} parent=5 // pred_check_branch
        %130 = sbr.rel (%p128) target = $region24
      $region23: #{tpu_custom_call.1} parent=5 // pred_region
        // Predicated region
        $region25: #{tpu_custom_call.1} parent=23 // pred_check
          %p131 = pneg %p32
        $region26: #{tpu_custom_call.1} parent=23 // pred_check_branch
          %133 = sbr.rel (%p131) target = $region28
        $region27: #{tpu_custom_call.1} parent=23 // pred_region
          %s134 = smul.u32 4, %s12
          %p135 = scmp.lt.s32.totalorder %s134, 7
          %s136 = scalar_select %p135, %s134, 7
          %s137 = smul.addr %s136, 4
          %s138 = scalar_lea.vmem %s0, %s137
          %s139 = smul.u32 4, %s12
        $region28: #{tpu_custom_call.1} parent=23 // pred_fallthru
          _
      $region24: #{tpu_custom_call.1} parent=5 // pred_fallthru
        _
      %p140 = scmp.le.s32.totalorder 1, %s12
      %p141 = scmp.lt.s32.totalorder %s12, 3
      %p142 = pnand %p140, %p141
      %p143 = pneg %p142
      // Predicated region
      $region29: #{tpu_custom_call.1} parent=5 // pred_check
        _
      $region30: #{tpu_custom_call.1} parent=5 // pred_check_branch
        %145 = sbr.rel (%p142) target = $region32
      $region31: #{tpu_custom_call.1} parent=5 // pred_region
        %s146 = ssub.s32 %s12, 1
        %s147 = smul.u32 4, %s17
        %p148 = scmp.lt.s32.totalorder %s147, 7
        %s149 = scalar_select %p148, %s147, 7
        %s150 = smul.addr %s149, 4
        %s151 = scalar_lea.vmem %s0, %s150
        %p152 = pneg %p38
        %p153 = pneg %p35
        %p154 = pneg %p59
        %p155 = pneg %p56
        %p156 = pneg %p80
        %p157 = pneg %p77
        %p158 = pneg %p106
        %p159 = pneg %p103
        %s160 = sand.u32 %s93, 1
        %s161 = scalar_lea.sflag [#allocation3], %s160
        %s162 = sand.u32 %s93, 1
        %s163 = smul.addr %s162, 16
        %s164 = scalar_lea.vmem [#allocation2], %s163
        %s165 = smul.u32 4, %s17
        %p166 = scmp.lt.s32.totalorder %s165, 7
        %s167 = scalar_select %p166, %s165, 7
        %s168 = smul.addr %s167, 4
        %s169 = scalar_lea.vmem %s0, %s168
        %s170 = smul.u32 4, %s17
        %s171 = smul.u32 4, %s17
        %s172 = ssub.s32 7, %s171
        %p173 = scmp.lt.s32.totalorder %s172, 4
        %s174 = scalar_select %p173, %s172, 4
        %s175 = smul.u32 64, %s174
        %v177 = vld [vmem:[%s169] sm:$0xf]
        %v178 = vld [vmem:[%s169 + $0x4] sm:$0xf]
        %v179 = vld [vmem:[%s169 + $0x8] sm:$0xf]
        %v180 = vld [vmem:[%s169 + $0xc] sm:$0xf]
        %v181 = vld [vmem:[%s1] sm:$0xf]
        %v182 = vld [vmem:[%s1 + $0x4] sm:$0xf]
        %v183 = vld [vmem:[%s1 + $0x8] sm:$0xf]
        %v184 = vld [vmem:[%s1 + $0xc] sm:$0xf]
        %v185 = vld [vmem:[%s1 + $0x10] sm:$0xf]
        %v186 = vld [vmem:[%s1 + $0x14] sm:$0xf]
        %v187 = vld [vmem:[%s2] sm:$0x1]
        %v189 = vlaneseq
        %v190 = vshrl.u32 %v189, 7
        %v191 = vsub.s32 0, %v190
        %v192 = vrot.slane %v187, %v191
        %v198 = vunpack.c.l.b16 %v177
        %v199 = vunpack.c.l.b16 %v178
        %v200 = vunpack.c.l.b16 %v179
        %v201 = vunpack.c.l.b16 %v180
        %v202 = vpack.c.b16 %v199, %v198
        %v203 = vpack.c.b16 %v201, %v200
        %v210 = vunpack.c.l.b16 %v181
        %v211 = vunpack.c.l.b16 %v182
        %v212 = vunpack.c.l.b16 %v183
        %v213 = vunpack.c.l.b16 %v184
        %v214 = vunpack.c.l.b16 %v185
        %v215 = vunpack.c.l.b16 %v186
        %v216 = vpack.c.b16 %v211, %v210
        %v217 = vpack.c.b16 %v213, %v212
        %v218 = vpack.c.b16 %v215, %v214
        %vm222 = vcmask 392192
        %v224 = vsel %vm222, %v202, 0
        %v227 = vsel %vm222, %v203, 0
        %229 = vmatprep.subr.bf16.mxu0 0
        %230 = vmatpush1.bf16.msra.mxu0 0
        %231 = vmatprep.subr.bf16.mxu0 0
        %232 = vmatpush1.bf16.msra.mxu0 0
        %233 = vmatprep.subr.bf16.mxu0 0
        %234 = vmatpush1.bf16.msra.mxu0 0
        %235 = vmatprep.subr.bf16.mxu0 0
        %236 = vmatpush1.bf16.msra.mxu0 0
        %237 = vmatprep.subr.bf16.mxu0 0
        %238 = vmatpush1.bf16.msra.mxu0 0
        %239 = vmatprep.subr.bf16.mxu0 0
        %240 = vmatpush1.bf16.msra.mxu0 %v218
        %241 = vmatprep.subr.bf16.mxu0 0
        %242 = vmatpush1.bf16.msra.mxu0 %v217
        %243 = vmatprep.subr.bf16.mxu0 0
        %244 = vmatpush1.bf16.msra.mxu0 %v216
        %245 = vmatprep.subr.bf16.mxu0 0
        %246 = vmatpush2.bf16.msra.mxu0 0
        %247 = vmatprep.subr.bf16.mxu0 0
        %248 = vmatpush2.bf16.msra.mxu0 0
        %249 = vmatprep.subr.bf16.mxu0 0
        %250 = vmatpush2.bf16.msra.mxu0 0
        %251 = vmatprep.subr.bf16.mxu0 0
        %252 = vmatpush2.bf16.msra.mxu0 0
        %253 = vmatprep.subr.bf16.mxu0 0
        %254 = vmatpush2.bf16.msra.mxu0 0
        %255 = vmatprep.subr.bf16.mxu0 0
        %256 = vmatpush2.bf16.msra.mxu0 0
        %257 = vmatprep.subr.bf16.mxu0 0
        %258 = vmatpush2.bf16.msra.mxu0 0
        %259 = vmatprep.subr.bf16.mxu0 0
        %260 = vmatpush2.bf16.msra.mxu0 0
        %261 = vmatprep.mubr.bf16.mxu0 0
        %262 = vmatmul.mubr.bf16.gmra.mxu0 %v224
        %v263 = vpop.f32.mrf.mxu0
        %v264 = vadd.f32 %v192, %v263
        %v265 = vpop.f32.mrf.mxu0
        %v266 = vpop.f32.mrf.mxu0
        %v267 = vadd.f32 %v192, %v266
        %v268 = vpop.f32.mrf.mxu0
        %269 = vmatprep.mubr.bf16.mxu0 0
        %270 = vmatmul.mubr.bf16.gmra.mxu0 %v227
        %v271 = vpop.f32.mrf.mxu0
        %v272 = vadd.f32 %v192, %v271
        %v273 = vpop.f32.mrf.mxu0
        %v274 = vpop.f32.mrf.mxu0
        %v275 = vadd.f32 %v192, %v274
        %v276 = vpop.f32.mrf.mxu0
        %277 = vdwg.mxu0
        %v278 = vpack.c.bf16 %v267, %v264
        %v279 = vpack.c.bf16 %v275, %v272
        %v282 = vunpack.c.l.b16 %v278
        %v283 = vunpack.c.h.b16 %v278
        %v284 = vunpack.c.l.b16 %v279
        %v285 = vunpack.c.h.b16 %v279
        %v286 = vpack.c.b16 %v282, %v282
        %v287 = vpack.c.b16 %v283, %v283
        %v288 = vpack.c.b16 %v284, %v284
        %v289 = vpack.c.b16 %v285, %v285
        %vm294 = vcmask 781312
        %295 = vst.msk [vmem:[%s164] sm:$0xf] %vm294, %v286
        %296 = vst.msk [vmem:[%s164 + $0x4] sm:$0xf] %vm294, %v287
        %297 = vst.msk [vmem:[%s164 + $0x8] sm:$0xf] %vm294, %v288
        %298 = vst.msk [vmem:[%s164 + $0xc] sm:$0xf] %vm294, %v289
        %s299 = sand.u32 %s93, 1
        %s300 = scalar_lea.sflag [#allocation3], %s299
        %s301 = sand.u32 %s93, 1
        %s302 = smul.addr %s301, 16
        %s303 = scalar_lea.vmem [#allocation2], %s302
        // Predicated region
        $region33: #{tpu_custom_call.1} parent=31 // pred_check
          %p304 = pneg %p103
        $region34: #{tpu_custom_call.1} parent=31 // pred_check_branch
          %306 = sbr.rel (%p304) target = $region36
        $region35: #{tpu_custom_call.1} parent=31 // pred_region
          %s307 = smul.u32 4, %s17
          %s308 = ssub.s32 7, %s307
          %p309 = scmp.lt.s32.totalorder %s308, 4
          %s310 = scalar_select %p309, %s308, 4
          %s311 = smul.u32 64, %s310
          %s313 = ssub.s32 256, %s311
          %314 = vsyncadd %s300, %s313
          %p315 = scmp.ne.s32.totalorder 0, %s311
          %s316 = smul.addr %s307, 64
          %s317 = scalar_lea.hbm %s3, %s316
          %s318 = smul.u32 4, %s310
          %s319 = sshll.u32 %s303, 4
          %s320 = int_to_ptr.vmem [resolvable:$true] %s319
          %s321 = sshll.u32 %s318, 4
          %325 = dma.vmem_to_hbm [thread:$0]  (%p315), %s320, %s321, %s317, %s300, 64, 64, 4
        $region36: #{tpu_custom_call.1} parent=31 // pred_fallthru
          _
      $region32: #{tpu_custom_call.1} parent=5 // pred_fallthru
        _
      %p326 = scmp.le.s32.totalorder 2, %s12
      // Predicated region
      $region37: #{tpu_custom_call.1} parent=5 // pred_check
        %p327 = pneg %p326
      $region38: #{tpu_custom_call.1} parent=5 // pred_check_branch
        %329 = sbr.rel (%p327) target = $region40
      $region39: #{tpu_custom_call.1} parent=5 // pred_region
        %s330 = ssub.s32 %s12, 2
        // Predicated region
        $region41: #{tpu_custom_call.1} parent=39 // pred_check
          %p331 = pneg %p109
        $region42: #{tpu_custom_call.1} parent=39 // pred_check_branch
          %333 = sbr.rel (%p331) target = $region44
        $region43: #{tpu_custom_call.1} parent=39 // pred_region
          %s334 = sand.u32 %s94, 1
          %s335 = scalar_lea.sflag [#allocation3], %s334
          %s336 = sand.u32 %s94, 1
          %s337 = smul.addr %s336, 16
          %s338 = scalar_lea.vmem [#allocation2], %s337
          %339 = dma.done %s335, 256
        $region44: #{tpu_custom_call.1} parent=39 // pred_fallthru
          _
      $region40: #{tpu_custom_call.1} parent=5 // pred_fallthru
        _
    $region6: #{tpu_custom_call.1} parent=1 // loop_footer
      %s16 = sadd.s32 1, %s12
    $region7: #{tpu_custom_call.1} parent=1 // loop_footer_branch
      %11 = sbr.rel target = $region3
    $region8: #{tpu_custom_call.1} parent=1 // loop_exit
      _
    %340 = vsyncpa [#allocation3], 1
    %s341 = scalar_lea.sflag [#allocation3], 1
    %342 = vsyncpa %s341, 1

</llo_original>
